<compile_context>
chip_gen: v6e
topology: v6e:2x2x1
jax: 0.10.0
libtpu: 0.0.40
codegen_flags: <defaults>
</compile_context>

<pallas_src>
import functools

import jax
import jax.numpy as jnp
from jax.experimental import pallas as pl
from jax.experimental.pallas import tpu as pltpu


# ---------------------------------------------------------------------------
# Pallas kernel: one (tm, Kp) x (Kp, Np) tile -> ReLU(x @ W + b)
# ---------------------------------------------------------------------------
def basic_block_kernel(x_ref, w_ref, b_ref, o_ref):
    y = jnp.dot(x_ref[...], w_ref[...], preferred_element_type=jnp.float32)
    y = y + b_ref[...]
    o_ref[...] = jnp.maximum(y, 0.0).astype(o_ref.dtype)


def _round_up(v, m):
    return (v + m - 1) // m * m


# ---------------------------------------------------------------------------
# Wrapper: pad to TPU-friendly tiles, run the fused kernel, slice back.
# ---------------------------------------------------------------------------
def basic_block(x, t, w, b, *, block_m=128):
    """ReLU(x @ w + b).  x: (..., dim_in), w: (dim_in, dim_out), b: (dim_out,).

    `t` is accepted for signature parity with the PyTorch module and ignored.
    """
    del t  # unused by BasicBlock.forward
    orig_lead = x.shape[:-1]
    dim_in, dim_out = w.shape

    x2 = x.reshape(-1, dim_in).astype(jnp.float32)
    M = x2.shape[0]

    # Pad lanes (last dim) to 128 and sublanes (batch rows) to >= 8.
    Kp = _round_up(dim_in, 128)
    Np = _round_up(dim_out, 128)
    tm = min(block_m, _round_up(max(M, 8), 8))
    Mp = _round_up(max(M, 8), tm)

    x_p = jnp.zeros((Mp, Kp), jnp.float32).at[:M, :dim_in].set(x2)
    w_p = jnp.zeros((Kp, Np), jnp.float32).at[:dim_in, :dim_out].set(
        w.astype(jnp.float32))
    b_p = jnp.zeros((1, Np), jnp.float32).at[0, :dim_out].set(
        b.astype(jnp.float32))

    grid = (Mp // tm,)
    out = pl.pallas_call(
        basic_block_kernel,
        out_shape=jax.ShapeDtypeStruct((Mp, Np), jnp.float32),
        grid_spec=pltpu.PrefetchScalarGridSpec(
            num_scalar_prefetch=0,
            grid=grid,
            in_specs=[
                pl.BlockSpec((tm, Kp), lambda i: (i, 0)),   # x tile
                pl.BlockSpec((Kp, Np), lambda i: (0, 0)),   # full weight
                pl.BlockSpec((1, Np), lambda i: (0, 0)),    # bias row
            ],
            out_specs=pl.BlockSpec((tm, Np), lambda i: (i, 0)),
        ),
        compiler_params=pltpu.CompilerParams(
            dimension_semantics=("parallel",),
        ),
    )(x_p, w_p, b_p)

    out = out[:M, :dim_out]
    return out.reshape(*orig_lead, dim_out)


# ---------------------------------------------------------------------------
# Pure-JAX reference (correctness check)
# ---------------------------------------------------------------------------
def basic_block_reference(x, t, w, b):
    del t
    y = x.astype(jnp.float32) @ w.astype(jnp.float32) + b.astype(jnp.float32)
    return jnp.maximum(y, 0.0)


# ---------------------------------------------------------------------------
if __name__ == "__main__":
    key = jax.random.PRNGKey(0)
    kx, kt, kw, kb = jax.random.split(key, 4)

    # Small shapes consistent with the module: x is (batch, dim_in).
    B = 2
    dim_in = 64
    dim_out = 128
    n_cond = 1000

    x = jax.random.normal(kx, (B, dim_in), jnp.float32)
    t = jax.random.randint(kt, (B,), 0, n_cond, jnp.int32)  # unused by forward
    # Weight stored as (dim_in, dim_out) == PyTorch nn.Linear weight transposed.
    w = jax.random.normal(kw, (dim_in, dim_out), jnp.float32) * 0.05
    b = jax.random.normal(kb, (dim_out,), jnp.float32) * 0.05

    fwd = jax.jit(functools.partial(basic_block, block_m=128))
    out = fwd(x, t, w, b)
    out = jax.block_until_ready(out)

    ref = basic_block_reference(x, t, w, b)
    assert out.shape == (B, dim_out), out.shape
    assert jnp.allclose(out, ref, atol=1e-5, rtol=1e-5), "mismatch vs reference"

    print("KERNEL_OK")
</pallas_src>

<mosaic_0001>
module attributes {stable_mosaic.version = 11 : i64} {
  func.func @basic_block_kernel(%arg0: i32, %arg1: memref<8x128xf32, #tpu.memory_space<vmem>>, %arg2: memref<128x128xf32, #tpu.memory_space<vmem>>, %arg3: memref<1x128xf32, #tpu.memory_space<vmem>>, %arg4: memref<8x128xf32, #tpu.memory_space<vmem>>) attributes {dimension_semantics = [#tpu.dimension_semantics<parallel>], iteration_bounds = array<i64: 1>, scalar_prefetch = 0 : i64, scratch_operands = 0 : i64, tpu.core_type = #tpu.core_type<tc>, window_params = [{transform_indices = @transform_0, window_bounds = array<i64: 8, 128>}, {pipeline_mode = #tpu.pipeline_mode<synchronous>, transform_indices = @transform_1, window_bounds = array<i64: 128, 128>}, {pipeline_mode = #tpu.pipeline_mode<synchronous>, transform_indices = @transform_2, window_bounds = array<i64: 1, 128>}, {transform_indices = @transform_3, window_bounds = array<i64: 8, 128>}]} {
    %c0 = arith.constant 0 : index
    %c0_0 = arith.constant 0 : index
    %0 = vector.load %arg1[%c0, %c0_0] : memref<8x128xf32, #tpu.memory_space<vmem>>, vector<8x128xf32>
    %c0_1 = arith.constant 0 : index
    %c0_2 = arith.constant 0 : index
    %1 = vector.load %arg2[%c0_1, %c0_2] : memref<128x128xf32, #tpu.memory_space<vmem>>, vector<128x128xf32>
    %cst = arith.constant dense<0.000000e+00> : vector<8x128xf32>
    %2 = tpu.matmul %0, %1, %cst {dimension_numbers = #tpu.dot_dimension_numbers<[1], [0], [0], [1], [0, 0, 1, 1], [], []>} : vector<8x128xf32>, vector<128x128xf32>, vector<8x128xf32> -> vector<8x128xf32>
    %c0_3 = arith.constant 0 : index
    %c0_4 = arith.constant 0 : index
    %3 = vector.load %arg3[%c0_3, %c0_4] : memref<1x128xf32, #tpu.memory_space<vmem>>, vector<1x128xf32>
    %4 = vector.broadcast %3 : vector<1x128xf32> to vector<8x128xf32>
    %5 = arith.addf %2, %4 : vector<8x128xf32>
    %cst_5 = arith.constant 0.000000e+00 : f32
    %6 = vector.broadcast %cst_5 : f32 to vector<8x128xf32>
    %7 = arith.maximumf %5, %6 : vector<8x128xf32>
    %c0_6 = arith.constant 0 : index
    %c0_7 = arith.constant 0 : index
    %8 = vector.load %arg4[%c0_6, %c0_7] : memref<8x128xf32, #tpu.memory_space<vmem>>, vector<8x128xf32>
    tpu.vector_store %arg4[%c0_6, %c0_7], %7 {strides = array<i32>} : memref<8x128xf32, #tpu.memory_space<vmem>>, vector<8x128xf32>,
    return
  }
  func.func @transform_0(%arg0: i32) -> (i32, i32) {
    %c0_i32 = arith.constant 0 : i32
    %c0_i32_0 = arith.constant 0 : i32
    return %arg0, %c0_i32 : i32, i32
  }
  func.func @transform_1(%arg0: i32) -> (i32, i32) {
    %c0_i32 = arith.constant 0 : i32
    %c0_i32_0 = arith.constant 0 : i32
    %c0_i32_1 = arith.constant 0 : i32
    return %c0_i32, %c0_i32_0 : i32, i32
  }
  func.func @transform_2(%arg0: i32) -> (i32, i32) {
    %c0_i32 = arith.constant 0 : i32
    %c0_i32_0 = arith.constant 0 : i32
    %c0_i32_1 = arith.constant 0 : i32
    return %c0_i32, %c0_i32_0 : i32, i32
  }
  func.func @transform_3(%arg0: i32) -> (i32, i32) {
    %c0_i32 = arith.constant 0 : i32
    %c0_i32_0 = arith.constant 0 : i32
    return %arg0, %c0_i32 : i32, i32
  }
}

</mosaic_0001>

<llo_original>
// kernel: basic_block.1
$region0: #{basic_block.1}
  #allocation0 [shape = 'u32[]', space=smem, size = 0x4, offset = 0x4, fixed_abs, tag = 'smem constant byte address 0x4 - core index']
  #allocation1 [shape = 'u32[144,128]{1,0:T(1,128)}', space=vmem, size = 0x12000, scoped, tag = 'internal scratch']
  %s0 = inlined_call_operand.vmem [shape: f32[8,128], index: 0, kind: input, shape index: {}]
  %s1 = inlined_call_operand.vmem [shape: f32[128,128], index: 1, kind: input, shape index: {}]
  %s2 = inlined_call_operand.vmem [shape: f32[1,128], index: 2, kind: input, shape index: {}]
  %s3 = inlined_call_operand.vmem [shape: f32[8,128], index: 3, kind: output, shape index: {}]
  %s4 = sld [smem:[#allocation0]]
  $region22: #{basic_block.1} parent=0
    _
  %s6 = ssub.s32 1, %s4
  %s7 = scalar_select 0, %s6, %s4
  // Predicated region
  $region2: #{basic_block.1} parent=0 // pred_check
    _
  $region3: #{basic_block.1} parent=0 // pred_check_branch
    %9 = sbr.rel (0) target = $region5
  $region4: #{basic_block.1} parent=0 // pred_region
    _
  $region5: #{basic_block.1} parent=0 // pred_fallthru
    _
  // Predicated region
  $region6: #{basic_block.1} parent=0 // pred_check
    _
  $region7: #{basic_block.1} parent=0 // pred_check_branch
    %11 = sbr.rel (0) target = $region9
  $region8: #{basic_block.1} parent=0 // pred_region
    _
  $region9: #{basic_block.1} parent=0 // pred_fallthru
    _
  // Predicated region
  $region10: #{basic_block.1} parent=0 // pred_check
    _
  $region11: #{basic_block.1} parent=0 // pred_check_branch
    %13 = sbr.rel (0) target = $region13
  $region12: #{basic_block.1} parent=0 // pred_region
    _
  $region13: #{basic_block.1} parent=0 // pred_fallthru
    _
  %v14 = vld [vmem:[%s0] sm:$0xff]
  %v15 = vld [vmem:[%s1] sm:$0xff]
  %v16 = vld [vmem:[%s1 + $0x8] sm:$0xff]
  %v17 = vld [vmem:[%s1 + $0x10] sm:$0xff]
  %v18 = vld [vmem:[%s1 + $0x18] sm:$0xff]
  %v19 = vld [vmem:[%s1 + $0x20] sm:$0xff]
  %v20 = vld [vmem:[%s1 + $0x28] sm:$0xff]
  %v21 = vld [vmem:[%s1 + $0x30] sm:$0xff]
  %v22 = vld [vmem:[%s1 + $0x38] sm:$0xff]
  %v23 = vld [vmem:[%s1 + $0x40] sm:$0xff]
  %v24 = vld [vmem:[%s1 + $0x48] sm:$0xff]
  %v25 = vld [vmem:[%s1 + $0x50] sm:$0xff]
  %v26 = vld [vmem:[%s1 + $0x58] sm:$0xff]
  %v27 = vld [vmem:[%s1 + $0x60] sm:$0xff]
  %v28 = vld [vmem:[%s1 + $0x68] sm:$0xff]
  %v29 = vld [vmem:[%s1 + $0x70] sm:$0xff]
  %v30 = vld [vmem:[%s1 + $0x78] sm:$0xff]
  %v31 = vld [vmem:[%s2] sm:$0x1]
  %v33 = vlaneseq
  %v34 = vshrl.u32 %v33, 7
  %v35 = vsub.s32 0, %v34
  %v36 = vrot.slane %v31, %v35
  %38 = vmatprep.subr.mxu0 0.0
  %39 = vmatpush1.msra.mxu0 %v30
  %40 = vmatprep.subr.mxu0 0.0
  %41 = vmatpush1.msra.mxu0 %v29
  %42 = vmatprep.subr.mxu0 0.0
  %43 = vmatpush1.msra.mxu0 %v28
  %44 = vmatprep.subr.mxu0 0.0
  %45 = vmatpush1.msra.mxu0 %v27
  %46 = vmatprep.subr.mxu0 0.0
  %47 = vmatpush1.msra.mxu0 %v26
  %48 = vmatprep.subr.mxu0 0.0
  %49 = vmatpush1.msra.mxu0 %v25
  %50 = vmatprep.subr.mxu0 0.0
  %51 = vmatpush1.msra.mxu0 %v24
  %52 = vmatprep.subr.mxu0 0.0
  %53 = vmatpush1.msra.mxu0 %v23
  %54 = vmatprep.subr.mxu0 0.0
  %55 = vmatpush1.msra.mxu0 %v22
  %56 = vmatprep.subr.mxu0 0.0
  %57 = vmatpush1.msra.mxu0 %v21
  %58 = vmatprep.subr.mxu0 0.0
  %59 = vmatpush1.msra.mxu0 %v20
  %60 = vmatprep.subr.mxu0 0.0
  %61 = vmatpush1.msra.mxu0 %v19
  %62 = vmatprep.subr.mxu0 0.0
  %63 = vmatpush1.msra.mxu0 %v18
  %64 = vmatprep.subr.mxu0 0.0
  %65 = vmatpush1.msra.mxu0 %v17
  %66 = vmatprep.subr.mxu0 0.0
  %67 = vmatpush1.msra.mxu0 %v16
  %68 = vmatprep.subr.mxu0 0.0
  %69 = vmatpush1.msra.mxu0 %v15
  %70 = vmatprep.subr.mxu0 0.0
  %71 = vmatpush2.msra.mxu0 0.0
  %72 = vmatprep.subr.mxu0 0.0
  %73 = vmatpush2.msra.mxu0 0.0
  %74 = vmatprep.subr.mxu0 0.0
  %75 = vmatpush2.msra.mxu0 0.0
  %76 = vmatprep.subr.mxu0 0.0
  %77 = vmatpush2.msra.mxu0 0.0
  %78 = vmatprep.subr.mxu0 0.0
  %79 = vmatpush2.msra.mxu0 0.0
  %80 = vmatprep.subr.mxu0 0.0
  %81 = vmatpush2.msra.mxu0 0.0
  %82 = vmatprep.subr.mxu0 0.0
  %83 = vmatpush2.msra.mxu0 0.0
  %84 = vmatprep.subr.mxu0 0.0
  %85 = vmatpush2.msra.mxu0 0.0
  %86 = vmatprep.subr.mxu0 0.0
  %87 = vmatpush2.msra.mxu0 0.0
  %88 = vmatprep.subr.mxu0 0.0
  %89 = vmatpush2.msra.mxu0 0.0
  %90 = vmatprep.subr.mxu0 0.0
  %91 = vmatpush2.msra.mxu0 0.0
  %92 = vmatprep.subr.mxu0 0.0
  %93 = vmatpush2.msra.mxu0 0.0
  %94 = vmatprep.subr.mxu0 0.0
  %95 = vmatpush2.msra.mxu0 0.0
  %96 = vmatprep.subr.mxu0 0.0
  %97 = vmatpush2.msra.mxu0 0.0
  %98 = vmatprep.subr.mxu0 0.0
  %99 = vmatpush2.msra.mxu0 0.0
  %100 = vmatprep.subr.mxu0 0.0
  %101 = vmatpush2.msra.mxu0 0.0
  %102 = vmatprep.mubr.f32.mxu0 0.0
  %103 = vmatmul.mubr.f32.gmra.mxu0 %v14
  %v104 = vpop.f32.mrf.mxu0
  %v105 = vadd.f32 %v36, %v104
  %v106 = vpop.f32.mrf.mxu0
  %107 = vdwg.mxu0
  %v108 = vmax.f32 %v105, 0.0
  %109 = vst [vmem:[%s3] sm:$0xff] %v108
  // Predicated region
  $region14: #{basic_block.1} parent=0 // pred_check
    _
  $region15: #{basic_block.1} parent=0 // pred_check_branch
    %111 = sbr.rel (0) target = $region17
  $region16: #{basic_block.1} parent=0 // pred_region
    _
  $region17: #{basic_block.1} parent=0 // pred_fallthru
    _
  // Predicated region
  $region18: #{basic_block.1} parent=0 // pred_check
    _
  $region19: #{basic_block.1} parent=0 // pred_check_branch
    %113 = sbr.rel (0) target = $region21
  $region20: #{basic_block.1} parent=0 // pred_region
    _
  $region21: #{basic_block.1} parent=0 // pred_fallthru
    _

</llo_original>
